<compile_context>
chip_gen: v7x
topology: tpu7x:2x2x1
jax: 0.10.0
libtpu: 0.0.40
codegen_flags: <defaults>
</compile_context>

<pallas_src>
import functools

import jax
import jax.numpy as jnp
from jax.experimental import pallas as pl
from jax.experimental.pallas import tpu as pltpu


_NSPLIT = 2  # leading "parallel" grid axis: v7x has 2 TensorCores; harmless on v5e/v6e.


def _round_up(x, m):
    return ((x + m - 1) // m) * m


def _vmem_budget_bytes():
    """~3/4 of physical VMEM: v7x 64 MiB -> 48 MiB, v5e/v6e 128 MiB -> 96 MiB."""
    try:
        cap = pltpu.get_tpu_info().vmem_capacity_bytes
    except Exception:
        cap = 64 * 1024 * 1024  # conservative (v7x-sized) fallback
    return int(cap) * 3 // 4


def _pick_spatial_tile(hw, row_bytes, nsplit, vmem_budget):
    """Largest lane-aligned (multiple-of-128) spatial tile such that the double-buffered
    streamed x tile stays within ~1/3 of the VMEM budget (<= 2 MiB per buffer), capped at
    what a single grid split actually needs."""
    per_buffer_target = min(2 * 1024 * 1024, vmem_budget // 6)
    cap = max(128, (per_buffer_target // row_bytes) // 128 * 128)
    need = _round_up(pl.cdiv(hw, nsplit), 128)
    return min(cap, need)


def _stream_pool_kernel(x_ref, w1t_ref, acc_ref):
    """Per spatial tile: 1x1 conv (contraction over C) + ReLU + partial spatial sum.

    x_ref:   [B, C, THW]  bf16   streamed tile, lane-dense on the spatial axis
    w1t_ref: [Fp, C]      f32    resident synthetic-trunk projection (transposed)
    acc_ref: [1, Fp, B]   f32    output block; resident accumulator over the HW axis
    """
    i = pl.program_id(1)

    @pl.when(i == 0)
    def _():
        acc_ref[...] = jnp.zeros_like(acc_ref)

    b_sz, c_sz, _ = x_ref.shape
    w1t = w1t_ref[...]                                       # hoisted weight load

    cols = []
    for b in range(b_sz):                                    # B is small and static
        xb = x_ref[b]                                        # [C, THW] bf16
        if c_sz <= 8:
            # Small synthetic channel count: per-channel VPU broadcast-MACs.  An MXU
            # dot at K=4 is ~3% contraction-depth utilization, and this loop is
            # HBM-streaming-bound, so the otherwise idle VALU slots are free.
            xf = xb.astype(jnp.float32)
            hb = w1t[:, 0:1] * xf[0:1, :]
            for c in range(1, c_sz):
                hb = hb + w1t[:, c:c + 1] * xf[c:c + 1, :]
        else:
            # TODO(synk): a real trunk (C >= 128) takes the MXU path.
            hb = jnp.dot(w1t.astype(jnp.bfloat16), xb,
                         preferred_element_type=jnp.float32)
        hb = jnp.maximum(hb, 0.0)                            # ReLU, [Fp, THW]
        # Partial AdaptiveAvgPool2d((1,1)) sum over the lane (spatial) axis.
        cols.append(jnp.sum(hb, axis=1, keepdims=True))      # [Fp, 1]

    acc_ref[0] = acc_ref[0] + jnp.concatenate(cols, axis=1)  # [Fp, B]


def _head_kernel(part_ref, w2_ref, aux_ref, out_ref, *, inv_hw):
    """Combine partial pools, then Linear + training-mode BatchNorm1d.

    part_ref: [NSPLIT, B, Fp] f32   per-split pooled sums
    w2_ref:   [Fp, Ep]        bf16  Linear weight (zero-padded)
    aux_ref:  [3, Ep]         f32   rows: gamma, beta, Linear bias (zero-padded)
    out_ref:  [B, Ep]         f32
    """
    feats = jnp.sum(part_ref[...], axis=0) * inv_hw          # [B, Fp] global avg pool
    z = jnp.dot(feats.astype(jnp.bfloat16), w2_ref[...],
                preferred_element_type=jnp.float32)          # [B, Ep]
    z = z + aux_ref[2:3, :]                                  # Linear bias
    # BatchNorm1d, training mode: batch mean / biased variance.
    mean = jnp.mean(z, axis=0, keepdims=True)
    var = jnp.mean((z - mean) ** 2, axis=0, keepdims=True)
    out_ref[...] = (aux_ref[0:1, :] * (z - mean) * jax.lax.rsqrt(var + 1e-5)
                    + aux_ref[1:2, :])                       # lane-dense [B, Ep] store


def encoder_cnn_forward(images, w1, w2, b2, gamma, beta):
    """images: NCHW float32 [B, C, H, W]. Returns [B, embed_size] float32."""
    B, C, H, W = images.shape
    HW = H * W
    F = w1.shape[1]
    E = w2.shape[1]
    Fp = _round_up(F, 128)
    Ep = _round_up(E, 128)

    vmem_budget = _vmem_budget_bytes()
    thw = _pick_spatial_tile(HW, B * C * 2, _NSPLIT, vmem_budget)
    n_tiles = pl.cdiv(HW, _NSPLIT * thw)
    hwp = _NSPLIT * thw * n_tiles

    # Natural NCHW flatten (no transpose); bf16 halves the streamed HBM bytes.  Zero-pad
    # the spatial axis to the tile grid: padded pixels give relu(0 * w) = 0 and add
    # nothing to the pooled sum (the pooling divisor below stays 1 / true HW).
    x = images.reshape(B, C, HW).astype(jnp.bfloat16)
    if hwp != HW:
        x = jnp.pad(x, ((0, 0), (0, 0), (0, hwp - HW)))

    # Zero-padded, lane-dense weights; padded rows/columns contribute exactly zero.
    w1t = jnp.zeros((Fp, C), jnp.float32).at[:F, :].set(w1.T.astype(jnp.float32))
    w2p = jnp.zeros((Fp, Ep), jnp.bfloat16).at[:F, :E].set(w2.astype(jnp.bfloat16))
    aux = (jnp.zeros((3, Ep), jnp.float32)
           .at[0, :E].set(gamma.astype(jnp.float32))
           .at[1, :E].set(beta.astype(jnp.float32))
           .at[2, :E].set(b2.astype(jnp.float32)))

    cost = pl.CostEstimate(
        flops=2 * B * hwp * C * Fp + B * hwp * Fp,
        transcendentals=0,
        bytes_accessed=B * C * hwp * 2 + Fp * C * 4 + _NSPLIT * Fp * B * 4)

    partials = pl.pallas_call(
        _stream_pool_kernel,
        out_shape=jax.ShapeDtypeStruct((_NSPLIT, Fp, B), jnp.float32),
        grid=(_NSPLIT, n_tiles),
        in_specs=[
            pl.BlockSpec((B, C, thw), lambda s, i: (0, 0, s * n_tiles + i)),
            pl.BlockSpec((Fp, C), lambda s, i: (0, 0)),      # tiny resident weight
        ],
        out_specs=pl.BlockSpec((1, Fp, B), lambda s, i: (s, 0, 0)),
        compiler_params=pltpu.CompilerParams(
            dimension_semantics=("parallel", "arbitrary"),   # split across TCs on v7x
            vmem_limit_bytes=vmem_budget,
        ),
        cost_estimate=cost,
    )(x, w1t)

    # Tiny layout fix-up only (NSPLIT*Fp*B elements): present the pooled partial sums
    # with the feature axis lane-dense for the head kernel.
    partials = jnp.transpose(partials, (0, 2, 1))            # [NSPLIT, B, Fp]

    out = pl.pallas_call(
        functools.partial(_head_kernel, inv_hw=1.0 / float(HW)),
        out_shape=jax.ShapeDtypeStruct((B, Ep), jnp.float32),
    )(partials, w2p, aux)

    return out[:, :E]


def _reference(images, w1, w2, b2, gamma, beta):
    """Pure-JAX reference mirroring the kernel's numeric path (bf16 activations)."""
    B, C, H, W = images.shape
    x = images.reshape(B, C, H * W).astype(jnp.bfloat16).astype(jnp.float32)
    h = jnp.einsum("bct,cf->btf", x, w1.astype(jnp.float32))
    h = jnp.maximum(h, 0.0)
    feats = jnp.mean(h, axis=1)
    z = jnp.dot(feats.astype(jnp.bfloat16), w2.astype(jnp.bfloat16),
                preferred_element_type=jnp.float32) + b2
    mean = jnp.mean(z, axis=0, keepdims=True)
    var = jnp.mean((z - mean) ** 2, axis=0, keepdims=True)
    return gamma * (z - mean) * jax.lax.rsqrt(var + 1e-5) + beta


if __name__ == "__main__":
    # Small shapes consistent with the module's forward (NCHW images).
    B, C, H, W = 2, 4, 16, 16
    FEAT = 64                     # stand-in for resnet.fc.in_features (=2048)
    EMBED = 32                    # embed_size

    key = jax.random.PRNGKey(0)
    k_img, k_w1, k_w2, k_b2, _, _ = jax.random.split(key, 6)

    images = jax.random.normal(k_img, (B, C, H, W), dtype=jnp.float32)
    w1 = jax.random.normal(k_w1, (C, FEAT), dtype=jnp.float32) * (1.0 / jnp.sqrt(C))
    w2 = jax.random.normal(k_w2, (FEAT, EMBED), dtype=jnp.float32) * (1.0 / jnp.sqrt(FEAT))
    b2 = jax.random.normal(k_b2, (EMBED,), dtype=jnp.float32) * 0.01
    gamma = jnp.ones((EMBED,), dtype=jnp.float32)   # BatchNorm1d weight init
    beta = jnp.zeros((EMBED,), dtype=jnp.float32)   # BatchNorm1d bias init

    out = encoder_cnn_forward(images, w1, w2, b2, gamma, beta)
    out = jax.block_until_ready(out)

    ref = jax.block_until_ready(_reference(images, w1, w2, b2, gamma, beta))

    assert out.shape == (B, EMBED)
    assert bool(jnp.all(jnp.isfinite(out)))
    max_err = float(jnp.max(jnp.abs(out - ref)))
    assert max_err < 5e-2, f"max abs error vs reference too large: {max_err}"
    print("KERNEL_OK")
</pallas_src>

<mosaic_0001>
module attributes {stable_mosaic.version = 11 : i64} {
  func.func @_stream_pool_kernel(%arg0: i32, %arg1: i32, %arg2: memref<2x4x128xbf16, #tpu.memory_space<vmem>>, %arg3: memref<128x4xf32, #tpu.memory_space<vmem>>, %arg4: memref<1x128x2xf32, #tpu.memory_space<vmem>>) attributes {dimension_semantics = [#tpu.dimension_semantics<parallel>, #tpu.dimension_semantics<arbitrary>], iteration_bounds = array<i64: 2, 1>, scalar_prefetch = 0 : i64, scratch_operands = 0 : i64, tpu.core_type = #tpu.core_type<tc>, window_params = [{transform_indices = @transform_0, window_bounds = array<i64: 2, 4, 128>}, {pipeline_mode = #tpu.pipeline_mode<synchronous>, transform_indices = @transform_1, window_bounds = array<i64: 128, 4>}, {transform_indices = @transform_2, window_bounds = array<i64: 1, 128, 2>}]} {
    %c0_i32 = arith.constant 0 : i32
    %0 = arith.cmpi eq, %arg1, %c0_i32 : i32
    %1 = arith.extui %0 : i1 to i32
    %c0_i32_0 = arith.constant 0 : i32
    %2 = arith.cmpi ne, %1, %c0_i32_0 : i32
    scf.if %2 {
      %cst_16 = arith.constant 0.000000e+00 : f32
      %71 = vector.broadcast %cst_16 : f32 to vector<1x128x2xf32>
      %c0_17 = arith.constant 0 : index
      %c0_18 = arith.constant 0 : index
      %c0_19 = arith.constant 0 : index
      %72 = vector.load %arg4[%c0_17, %c0_18, %c0_19] : memref<1x128x2xf32, #tpu.memory_space<vmem>>, vector<1x128x2xf32>
      tpu.vector_store %arg4[%c0_17, %c0_18, %c0_19], %71 {strides = array<i32>} : memref<1x128x2xf32, #tpu.memory_space<vmem>>, vector<1x128x2xf32>,
    } else {
    }
    %c0 = arith.constant 0 : index
    %c0_1 = arith.constant 0 : index
    %3 = vector.load %arg3[%c0, %c0_1] : memref<128x4xf32, #tpu.memory_space<vmem>>, vector<128x4xf32>
    %c0_2 = arith.constant 0 : index
    %c0_3 = arith.constant 0 : index
    %c0_4 = arith.constant 0 : index
    %4 = vector.load %arg2[%c0_2, %c0_3, %c0_4] : memref<2x4x128xbf16, #tpu.memory_space<vmem>>, vector<1x4x128xbf16>
    %5 = vector.shape_cast %4 : vector<1x4x128xbf16> to vector<4x128xbf16>
    %6 = arith.extf %5 : vector<4x128xbf16> to vector<4x128xf32>
    %7 = vector.extract_strided_slice %3 {offsets = [0, 0], sizes = [128, 1], strides = [1, 1]} : vector<128x4xf32> to vector<128x1xf32>
    %8 = vector.extract_strided_slice %6 {offsets = [0, 0], sizes = [1, 128], strides = [1, 1]} : vector<4x128xf32> to vector<1x128xf32>
    %9 = vector.broadcast %7 : vector<128x1xf32> to vector<128x128xf32>
    %10 = vector.broadcast %8 : vector<1x128xf32> to vector<128x128xf32>
    %11 = arith.mulf %9, %10 : vector<128x128xf32>
    %12 = vector.extract_strided_slice %3 {offsets = [0, 1], sizes = [128, 1], strides = [1, 1]} : vector<128x4xf32> to vector<128x1xf32>
    %13 = vector.extract_strided_slice %6 {offsets = [1, 0], sizes = [1, 128], strides = [1, 1]} : vector<4x128xf32> to vector<1x128xf32>
    %14 = vector.broadcast %12 : vector<128x1xf32> to vector<128x128xf32>
    %15 = vector.broadcast %13 : vector<1x128xf32> to vector<128x128xf32>
    %16 = arith.mulf %14, %15 : vector<128x128xf32>
    %17 = arith.addf %11, %16 : vector<128x128xf32>
    %18 = vector.extract_strided_slice %3 {offsets = [0, 2], sizes = [128, 1], strides = [1, 1]} : vector<128x4xf32> to vector<128x1xf32>
    %19 = vector.extract_strided_slice %6 {offsets = [2, 0], sizes = [1, 128], strides = [1, 1]} : vector<4x128xf32> to vector<1x128xf32>
    %20 = vector.broadcast %18 : vector<128x1xf32> to vector<128x128xf32>
    %21 = vector.broadcast %19 : vector<1x128xf32> to vector<128x128xf32>
    %22 = arith.mulf %20, %21 : vector<128x128xf32>
    %23 = arith.addf %17, %22 : vector<128x128xf32>
    %24 = vector.extract_strided_slice %3 {offsets = [0, 3], sizes = [128, 1], strides = [1, 1]} : vector<128x4xf32> to vector<128x1xf32>
    %25 = vector.extract_strided_slice %6 {offsets = [3, 0], sizes = [1, 128], strides = [1, 1]} : vector<4x128xf32> to vector<1x128xf32>
    %26 = vector.broadcast %24 : vector<128x1xf32> to vector<128x128xf32>
    %27 = vector.broadcast %25 : vector<1x128xf32> to vector<128x128xf32>
    %28 = arith.mulf %26, %27 : vector<128x128xf32>
    %29 = arith.addf %23, %28 : vector<128x128xf32>
    %cst = arith.constant 0.000000e+00 : f32
    %30 = vector.broadcast %cst : f32 to vector<128x128xf32>
    %31 = arith.maximumf %29, %30 : vector<128x128xf32>
    %cst_5 = arith.constant dense<0.000000e+00> : vector<128xf32>
    %32 = vector.multi_reduction <add>, %31, %cst_5 [1] : vector<128x128xf32> to vector<128xf32>
    %33 = vector.shape_cast %32 : vector<128xf32> to vector<128x1xf32>
    %c1 = arith.constant 1 : index
    %c0_6 = arith.constant 0 : index
    %c0_7 = arith.constant 0 : index
    %34 = vector.load %arg2[%c1, %c0_6, %c0_7] : memref<2x4x128xbf16, #tpu.memory_space<vmem>>, vector<1x4x128xbf16>
    %35 = vector.shape_cast %34 : vector<1x4x128xbf16> to vector<4x128xbf16>
    %36 = arith.extf %35 : vector<4x128xbf16> to vector<4x128xf32>
    %37 = vector.extract_strided_slice %3 {offsets = [0, 0], sizes = [128, 1], strides = [1, 1]} : vector<128x4xf32> to vector<128x1xf32>
    %38 = vector.extract_strided_slice %36 {offsets = [0, 0], sizes = [1, 128], strides = [1, 1]} : vector<4x128xf32> to vector<1x128xf32>
    %39 = vector.broadcast %37 : vector<128x1xf32> to vector<128x128xf32>
    %40 = vector.broadcast %38 : vector<1x128xf32> to vector<128x128xf32>
    %41 = arith.mulf %39, %40 : vector<128x128xf32>
    %42 = vector.extract_strided_slice %3 {offsets = [0, 1], sizes = [128, 1], strides = [1, 1]} : vector<128x4xf32> to vector<128x1xf32>
    %43 = vector.extract_strided_slice %36 {offsets = [1, 0], sizes = [1, 128], strides = [1, 1]} : vector<4x128xf32> to vector<1x128xf32>
    %44 = vector.broadcast %42 : vector<128x1xf32> to vector<128x128xf32>
    %45 = vector.broadcast %43 : vector<1x128xf32> to vector<128x128xf32>
    %46 = arith.mulf %44, %45 : vector<128x128xf32>
    %47 = arith.addf %41, %46 : vector<128x128xf32>
    %48 = vector.extract_strided_slice %3 {offsets = [0, 2], sizes = [128, 1], strides = [1, 1]} : vector<128x4xf32> to vector<128x1xf32>
    %49 = vector.extract_strided_slice %36 {offsets = [2, 0], sizes = [1, 128], strides = [1, 1]} : vector<4x128xf32> to vector<1x128xf32>
    %50 = vector.broadcast %48 : vector<128x1xf32> to vector<128x128xf32>
    %51 = vector.broadcast %49 : vector<1x128xf32> to vector<128x128xf32>
    %52 = arith.mulf %50, %51 : vector<128x128xf32>
    %53 = arith.addf %47, %52 : vector<128x128xf32>
    %54 = vector.extract_strided_slice %3 {offsets = [0, 3], sizes = [128, 1], strides = [1, 1]} : vector<128x4xf32> to vector<128x1xf32>
    %55 = vector.extract_strided_slice %36 {offsets = [3, 0], sizes = [1, 128], strides = [1, 1]} : vector<4x128xf32> to vector<1x128xf32>
    %56 = vector.broadcast %54 : vector<128x1xf32> to vector<128x128xf32>
    %57 = vector.broadcast %55 : vector<1x128xf32> to vector<128x128xf32>
    %58 = arith.mulf %56, %57 : vector<128x128xf32>
    %59 = arith.addf %53, %58 : vector<128x128xf32>
    %cst_8 = arith.constant 0.000000e+00 : f32
    %60 = vector.broadcast %cst_8 : f32 to vector<128x128xf32>
    %61 = arith.maximumf %59, %60 : vector<128x128xf32>
    %cst_9 = arith.constant dense<0.000000e+00> : vector<128xf32>
    %62 = vector.multi_reduction <add>, %61, %cst_9 [1] : vector<128x128xf32> to vector<128xf32>
    %63 = vector.shape_cast %62 : vector<128xf32> to vector<128x1xf32>
    %c0_10 = arith.constant 0 : index
    %c0_11 = arith.constant 0 : index
    %c0_12 = arith.constant 0 : index
    %64 = vector.load %arg4[%c0_10, %c0_11, %c0_12] : memref<1x128x2xf32, #tpu.memory_space<vmem>>, vector<1x128x2xf32>
    %65 = vector.shape_cast %64 : vector<1x128x2xf32> to vector<128x2xf32>
    %66 = tpu.concatenate %33, %63 in 1 : vector<128x1xf32>, vector<128x1xf32> -> vector<128x2xf32>
    %67 = arith.addf %65, %66 : vector<128x2xf32>
    %c0_13 = arith.constant 0 : index
    %c0_14 = arith.constant 0 : index
    %c0_15 = arith.constant 0 : index
    %68 = vector.load %arg4[%c0_13, %c0_14, %c0_15] : memref<1x128x2xf32, #tpu.memory_space<vmem>>, vector<1x128x2xf32>
    %69 = vector.shape_cast %68 : vector<1x128x2xf32> to vector<128x2xf32>
    %70 = vector.shape_cast %67 : vector<128x2xf32> to vector<1x128x2xf32>
    tpu.vector_store %arg4[%c0_13, %c0_14, %c0_15], %70 {strides = array<i32>} : memref<1x128x2xf32, #tpu.memory_space<vmem>>, vector<1x128x2xf32>,
    return
  }
  func.func @transform_0(%arg0: i32, %arg1: i32) -> (i32, i32, i32) {
    %c1_i32 = arith.constant 1 : i32
    %0 = arith.muli %arg0, %c1_i32 : i32
    %1 = arith.addi %0, %arg1 : i32
    %c0_i32 = arith.constant 0 : i32
    %c0_i32_0 = arith.constant 0 : i32
    %c0_i32_1 = arith.constant 0 : i32
    return %c0_i32, %c0_i32_0, %1 : i32, i32, i32
  }
  func.func @transform_1(%arg0: i32, %arg1: i32) -> (i32, i32) {
    %c0_i32 = arith.constant 0 : i32
    %c0_i32_0 = arith.constant 0 : i32
    %c0_i32_1 = arith.constant 0 : i32
    return %c0_i32, %c0_i32_0 : i32, i32
  }
  func.func @transform_2(%arg0: i32, %arg1: i32) -> (i32, i32, i32) {
    %c0_i32 = arith.constant 0 : i32
    %c0_i32_0 = arith.constant 0 : i32
    %c0_i32_1 = arith.constant 0 : i32
    return %arg0, %c0_i32, %c0_i32_0 : i32, i32, i32
  }
}

</mosaic_0001>

<llo_original>
// kernel: tpu_custom_call.1
$region0: #{tpu_custom_call.1}
  #allocation0 [shape = 'u32[]', space=smem, size = 0x4, offset = 0x4, fixed_abs, tag = 'smem constant byte address 0x4 - core index']
  #allocation1 [shape = 'u32[144,128]{1,0:T(1,128)}', space=vmem, size = 0x12000, scoped, tag = 'internal scratch']
  %s0 = inlined_call_operand.vmem [shape: bf16[2,4,256], index: 0, kind: input, shape index: {}]
  %s1 = inlined_call_operand.vmem [shape: f32[128,4], index: 1, kind: input, shape index: {}]
  %s2 = inlined_call_operand.vmem [shape: f32[2,128,2], index: 2, kind: output, shape index: {}]
  %s3 = sld [smem:[#allocation0]]
  $region79: #{tpu_custom_call.1} parent=0
    _
  %s5 = ssub.s32 1, %s3
  %s6 = scalar_select 0, %s5, %s3
  $region1: #{tpu_custom_call.1} parent=0
    #allocation2 [shape = 'u8[4096]{0}', space=vmem, size = 0x1000, scoped, tag = 'input window, operand 0']
    loop: start=0, step=1, limit=4
    $region2: #{tpu_custom_call.1} parent=1 // loop_pre_header
      _
    $region3: #{tpu_custom_call.1} parent=1 // loop_header
      %s8 = sphi 0, %s12
      %p9 = scmp.ge.s32.totalorder %s8, 4
      %s15 = sphi 0, %s27
      %s16 = sphi 0, %s23
      %s17 = sphi 0, %s15
      %s18 = sphi 0, %s16
      %s19 = sphi 0, %s17
      %s20 = sphi 0, %s18
      %s32 = sphi 0, %s34
      %s35 = sphi 0, %s32
      %s36 = sphi 0, %s35
      %s52 = sphi 0, %s36
      %s56 = sphi 0, %s56
      %s58 = sphi 0, %s56
      %s59 = sphi 0, %s58
      %s73 = sphi 0, %s59
      %s79 = sphi 0, %s81
      %s82 = sphi 0, %s79
      %s83 = sphi 0, %s82
      %s99 = sphi 0, %s83
    $region4: #{tpu_custom_call.1} parent=1 // loop_header_branch
      %11 = sbr.rel (%p9) target = $region8
    $region5: #{tpu_custom_call.1} parent=1 // loop_body
      %s13 = ssub.s32 %s8, 1
      %s14 = ssub.s32 %s8, 2
      %s21 = sadd.s32 1, %s16
      %p22 = scmp.ge.s32.totalorder %s21, 1
      %s23 = scalar_select %p22, 0, %s21
      %s24 = sadd.s32 1, %s15
      %s25 = scalar_select %p22, %s24, %s15
      %p26 = scmp.ge.s32.totalorder %s25, 2
      %s27 = scalar_select %p26, 0, %s25
      %s28 = sadd.s32 %s15, %s16
      %s29 = sadd.s32 %s27, %s23
      %s30 = ssub.s32 %s28, %s29
      %p31 = scmp.eq.s32.totalorder %s30, 0
      %s33 = sadd.s32 %s32, 1
      %s34 = scalar_select %p31, %s32, %s33
      %p37 = pneg %p31
      %p38 = scmp.eq.s32.totalorder %s8, 1
      %p39 = por %p37, %p38
      %p40 = scmp.ne.s32.totalorder %s32, %s35
      %p41 = scmp.eq.s32.totalorder %s8, 0
      %p42 = por %p40, %p41
      %p43 = scmp.ne.s32.totalorder %s32, %s35
      %p44 = scmp.eq.s32.totalorder %s13, 1
      %p45 = por %p43, %p44
      %p46 = scmp.ne.s32.totalorder %s35, %s36
      %p47 = scmp.eq.s32.totalorder %s13, 0
      %p48 = por %p46, %p47
      %p49 = scmp.ne.s32.totalorder %s35, %s36
      %p50 = scmp.eq.s32.totalorder %s14, 1
      %p51 = por %p49, %p50
      %p53 = scmp.ne.s32.totalorder %s36, %s52
      %p54 = scmp.eq.s32.totalorder %s14, 0
      %p55 = por %p53, %p54
      %s57 = sadd.s32 %s56, 1
      %p60 = scmp.eq.s32.totalorder %s8, 1
      %p61 = scmp.ne.s32.totalorder %s56, %s58
      %p62 = scmp.eq.s32.totalorder %s8, 0
      %p63 = por %p61, %p62
      %p64 = scmp.ne.s32.totalorder %s56, %s58
      %p65 = scmp.eq.s32.totalorder %s13, 1
      %p66 = por %p64, %p65
      %p67 = scmp.ne.s32.totalorder %s58, %s59
      %p68 = scmp.eq.s32.totalorder %s13, 0
      %p69 = por %p67, %p68
      %p70 = scmp.ne.s32.totalorder %s58, %s59
      %p71 = scmp.eq.s32.totalorder %s14, 1
      %p72 = por %p70, %p71
      %p74 = scmp.ne.s32.totalorder %s59, %s73
      %p75 = scmp.eq.s32.totalorder %s14, 0
      %p76 = por %p74, %p75
      %s77 = ssub.s32 %s15, %s27
      %p78 = scmp.eq.s32.totalorder %s77, 0
      %s80 = sadd.s32 %s79, 1
      %s81 = scalar_select %p78, %s79, %s80
      %p84 = pneg %p78
      %p85 = scmp.eq.s32.totalorder %s8, 1
      %p86 = por %p84, %p85
      %p87 = scmp.ne.s32.totalorder %s79, %s82
      %p88 = scmp.eq.s32.totalorder %s8, 0
      %p89 = por %p87, %p88
      %p90 = scmp.ne.s32.totalorder %s79, %s82
      %p91 = scmp.eq.s32.totalorder %s13, 1
      %p92 = por %p90, %p91
      %p93 = scmp.ne.s32.totalorder %s82, %s83
      %p94 = scmp.eq.s32.totalorder %s13, 0
      %p95 = por %p93, %p94
      %p96 = scmp.ne.s32.totalorder %s82, %s83
      %p97 = scmp.eq.s32.totalorder %s14, 1
      %p98 = por %p96, %p97
      %p100 = scmp.ne.s32.totalorder %s83, %s99
      %p101 = scmp.eq.s32.totalorder %s14, 0
      %p102 = por %p100, %p101
      %p103 = scmp.le.s32.totalorder 1, %s8
      %p104 = scmp.lt.s32.totalorder %s8, 3
      %p105 = pnand %p103, %p104
      %p106 = pneg %p105
      // Predicated region
      $region9: #{tpu_custom_call.1} parent=5 // pred_check
        _
      $region10: #{tpu_custom_call.1} parent=5 // pred_check_branch
        %108 = sbr.rel (%p105) target = $region12
      $region11: #{tpu_custom_call.1} parent=5 // pred_region
        %s109 = ssub.s32 %s8, 1
        // Predicated region
        $region13: #{tpu_custom_call.1} parent=11 // pred_check
          %p110 = pneg %p69
        $region14: #{tpu_custom_call.1} parent=11 // pred_check_branch
          %112 = sbr.rel (%p110) target = $region16
        $region15: #{tpu_custom_call.1} parent=11 // pred_region
          _
        $region16: #{tpu_custom_call.1} parent=11 // pred_fallthru
          _
      $region12: #{tpu_custom_call.1} parent=5 // pred_fallthru
        _
      %p113 = scmp.lt.s32.totalorder %s8, 2
      // Predicated region
      $region17: #{tpu_custom_call.1} parent=5 // pred_check
        %p114 = pneg %p113
      $region18: #{tpu_custom_call.1} parent=5 // pred_check_branch
        %116 = sbr.rel (%p114) target = $region20
      $region19: #{tpu_custom_call.1} parent=5 // pred_region
        // Predicated region
        $region21: #{tpu_custom_call.1} parent=19 // pred_check
          %p117 = pneg %p42
        $region22: #{tpu_custom_call.1} parent=19 // pred_check_branch
          %119 = sbr.rel (%p117) target = $region24
        $region23: #{tpu_custom_call.1} parent=19 // pred_region
          %s120 = sand.u32 %s32, 1
          %s121 = sand.u32 %s32, 1
          %s122 = smul.addr %s121, 4
          %s123 = scalar_lea.vmem [#allocation2], %s122
          %s124 = sadd.s32 %s15, %s16
          %s125 = smul.addr %s124, 2
          %s126 = scalar_lea.vmem %s0, %s125
          // Predicated region
          $region25: #{tpu_custom_call.1} parent=23 // pred_check
            _
          $region26: #{tpu_custom_call.1} parent=23 // pred_check_branch
            %128 = sbr.rel (0) target = $region28
          $region27: #{tpu_custom_call.1} parent=23 // pred_region
            // Predicated region
            $region29: #{tpu_custom_call.1} parent=27 // pred_check
              _
            $region30: #{tpu_custom_call.1} parent=27 // pred_check_branch
              %130 = sbr.rel target = $region32
            $region31: #{tpu_custom_call.1} parent=27 // pred_region
              // Predicated region
              $region44: #{tpu_custom_call.1} parent=31 // pred_check
                _
              $region45: #{tpu_custom_call.1} parent=31 // pred_check_branch
                %147 = sbr.rel (0) target = $region47
              $region46: #{tpu_custom_call.1} parent=31 // pred_region
                loop: start=0, step=1, limit=1
                $region48: #{tpu_custom_call.1} parent=46 // loop_pre_header
                  _
                $region49: #{tpu_custom_call.1} parent=46 // loop_header
                  %s150 = sphi 0, %s154
                  %p151 = scmp.ge.s32.totalorder %s150, 1
                  %s155 = sphi %s126, %s126
                  %s156 = sphi %s123, %s123
                $region50: #{tpu_custom_call.1} parent=46 // loop_header_branch
                  %153 = sbr.rel (%p151) target = $region54
                $region51: #{tpu_custom_call.1} parent=46 // loop_body
                  %v157 = vld [vmem:[%s155] sm:$0x3]
                  %158 = vst [vmem:[%s156] sm:$0x3] %v157
                  %v159 = vld [vmem:[%s155 + $0x4] sm:$0x3]
                  %160 = vst [vmem:[%s156 + $0x2] sm:$0x3] %v159
                $region52: #{tpu_custom_call.1} parent=46 // loop_footer
                  %s154 = sadd.s32 1, %s150
                $region53: #{tpu_custom_call.1} parent=46 // loop_footer_branch
                  %149 = sbr.rel target = $region49
                $region54: #{tpu_custom_call.1} parent=46 // loop_exit
                  _
              $region47: #{tpu_custom_call.1} parent=31 // pred_fallthru
                _
            $region32: #{tpu_custom_call.1} parent=27 // pred_fallthru
              _
            // Predicated region
            $region33: #{tpu_custom_call.1} parent=27 // pred_check
              _
            $region34: #{tpu_custom_call.1} parent=27 // pred_check_branch
              %132 = sbr.rel (0) target = $region36
            $region35: #{tpu_custom_call.1} parent=27 // pred_region
              loop: start=0, step=1, limit=1
              $region37: #{tpu_custom_call.1} parent=35 // loop_pre_header
                _
              $region38: #{tpu_custom_call.1} parent=35 // loop_header
                %s135 = sphi 0, %s139
                %p136 = scmp.ge.s32.totalorder %s135, 1
                %s140 = sphi %s126, %s126
                %s141 = sphi %s123, %s123
              $region39: #{tpu_custom_call.1} parent=35 // loop_header_branch
                %138 = sbr.rel (%p136) target = $region43
              $region40: #{tpu_custom_call.1} parent=35 // loop_body
                %v142 = vld [vmem:[%s140] sm:$0x3]
                %143 = vst [vmem:[%s141] sm:$0x3] %v142
                %v144 = vld [vmem:[%s140 + $0x4] sm:$0x3]
                %145 = vst [vmem:[%s141 + $0x2] sm:$0x3] %v144
              $region41: #{tpu_custom_call.1} parent=35 // loop_footer
                %s139 = sadd.s32 1, %s135
              $region42: #{tpu_custom_call.1} parent=35 // loop_footer_branch
                %134 = sbr.rel target = $region38
              $region43: #{tpu_custom_call.1} parent=35 // loop_exit
                _
            $region36: #{tpu_custom_call.1} parent=27 // pred_fallthru
              _
          $region28: #{tpu_custom_call.1} parent=23 // pred_fallthru
            _
          %161 = vnop
        $region24: #{tpu_custom_call.1} parent=19 // pred_fallthru
          _
      $region20: #{tpu_custom_call.1} parent=5 // pred_fallthru
        _
      %p162 = scmp.le.s32.totalorder 1, %s8
      %p163 = scmp.lt.s32.totalorder %s8, 3
      %p164 = pnand %p162, %p163
      %p165 = pneg %p164
      // Predicated region
      $region55: #{tpu_custom_call.1} parent=5 // pred_check
        _
      $region56: #{tpu_custom_call.1} parent=5 // pred_check_branch
        %167 = sbr.rel (%p164) target = $region58
      $region57: #{tpu_custom_call.1} parent=5 // pred_region
        %s168 = ssub.s32 %s8, 1
        %s169 = sand.u32 %s35, 1
        %s170 = sand.u32 %s35, 1
        %s171 = smul.addr %s170, 4
        %s172 = scalar_lea.vmem [#allocation2], %s171
        // Predicated region
        $region59: #{tpu_custom_call.1} parent=57 // pred_check
          %p173 = pneg %p48
        $region60: #{tpu_custom_call.1} parent=57 // pred_check_branch
          %175 = sbr.rel (%p173) target = $region62
        $region61: #{tpu_custom_call.1} parent=57 // pred_region
          _
        $region62: #{tpu_custom_call.1} parent=57 // pred_fallthru
          _
        %s176 = sand.u32 %s35, 1
        %s177 = sand.u32 %s35, 1
        %s178 = smul.addr %s177, 4
        %s179 = scalar_lea.vmem [#allocation2], %s178
        %p180 = pneg %p48
        %p181 = pneg %p45
        %p182 = pneg %p69
        %p183 = pneg %p66
        %p184 = pneg %p95
        %p185 = pneg %p92
        %p186 = scmp.lt.s32.totalorder %s17, 1
        %s187 = scalar_select %p186, %s17, 1
        %s188 = smul.addr %s187, 16
        %s189 = smul.addr %s188, 8
        %s190 = scalar_lea.vmem %s2, %s189
        %s191 = sadd.s32 %s17, %s18
        %p192 = scmp.lt.s32.totalorder %s17, 1
        %s193 = scalar_select %p192, %s17, 1
        %s194 = smul.addr %s193, 16
        %s195 = smul.addr %s194, 8
        %s196 = scalar_lea.vmem %s2, %s195
        %p197 = scmp.eq.s32.totalorder %s18, 0
        // Predicated region
        $region63: #{tpu_custom_call.1} parent=57 // pred_check
          %p198 = pneg %p197
        $region64: #{tpu_custom_call.1} parent=57 // pred_check_branch
          %200 = sbr.rel (%p198) target = $region66
        $region65: #{tpu_custom_call.1} parent=57 // pred_region
          %vm201 = vcmask 15360
          %202 = vst.msk [vmem:[%s196] sm:$0xff] %vm201, 0.0
          %203 = vst.msk [vmem:[%s196 + $0x8] sm:$0xff] %vm201, 0.0
          %204 = vst.msk [vmem:[%s196 + $0x10] sm:$0xff] %vm201, 0.0
          %205 = vst.msk [vmem:[%s196 + $0x18] sm:$0xff] %vm201, 0.0
          %206 = vst.msk [vmem:[%s196 + $0x20] sm:$0xff] %vm201, 0.0
          %207 = vst.msk [vmem:[%s196 + $0x28] sm:$0xff] %vm201, 0.0
          %208 = vst.msk [vmem:[%s196 + $0x30] sm:$0xff] %vm201, 0.0
          %209 = vst.msk [vmem:[%s196 + $0x38] sm:$0xff] %vm201, 0.0
          %210 = vst.msk [vmem:[%s196 + $0x40] sm:$0xff] %vm201, 0.0
          %211 = vst.msk [vmem:[%s196 + $0x48] sm:$0xff] %vm201, 0.0
          %212 = vst.msk [vmem:[%s196 + $0x50] sm:$0xff] %vm201, 0.0
          %213 = vst.msk [vmem:[%s196 + $0x58] sm:$0xff] %vm201, 0.0
          %214 = vst.msk [vmem:[%s196 + $0x60] sm:$0xff] %vm201, 0.0
          %215 = vst.msk [vmem:[%s196 + $0x68] sm:$0xff] %vm201, 0.0
          %216 = vst.msk [vmem:[%s196 + $0x70] sm:$0xff] %vm201, 0.0
          %217 = vst.msk [vmem:[%s196 + $0x78] sm:$0xff] %vm201, 0.0
        $region66: #{tpu_custom_call.1} parent=57 // pred_fallthru
          _
        %v218 = vld [vmem:[%s1] sm:$0xff]
        %v219 = vld [vmem:[%s1 + $0x8] sm:$0xff]
        %v220 = vld [vmem:[%s1 + $0x10] sm:$0xff]
        %v221 = vld [vmem:[%s1 + $0x18] sm:$0xff]
        %v222 = vld [vmem:[%s1 + $0x20] sm:$0xff]
        %v223 = vld [vmem:[%s1 + $0x28] sm:$0xff]
        %v224 = vld [vmem:[%s1 + $0x30] sm:$0xff]
        %v225 = vld [vmem:[%s1 + $0x38] sm:$0xff]
        %v226 = vld [vmem:[%s1 + $0x40] sm:$0xff]
        %v227 = vld [vmem:[%s1 + $0x48] sm:$0xff]
        %v228 = vld [vmem:[%s1 + $0x50] sm:$0xff]
        %v229 = vld [vmem:[%s1 + $0x58] sm:$0xff]
        %v230 = vld [vmem:[%s1 + $0x60] sm:$0xff]
        %v231 = vld [vmem:[%s1 + $0x68] sm:$0xff]
        %v232 = vld [vmem:[%s1 + $0x70] sm:$0xff]
        %v233 = vld [vmem:[%s1 + $0x78] sm:$0xff]
        %v234 = vld [vmem:[%s172] sm:$0x3]
        %v235 = vunpack.c.l.bf16 %v234
        %237 = vset.pattern.permute.xlu0 0
        %238 = vperm.xlu0 %237, %v218
        %v239 = vpop.permute.xlu0 %238
        %242 = vset.pattern.permute.xlu0 0
        %243 = vperm.xlu0 %242, %v219
        %v244 = vpop.permute.xlu0 %243
        %247 = vset.pattern.permute.xlu0 0
        %248 = vperm.xlu0 %247, %v220
        %v249 = vpop.permute.xlu0 %248
        %252 = vset.pattern.permute.xlu0 0
        %253 = vperm.xlu0 %252, %v221
        %v254 = vpop.permute.xlu0 %253
        %257 = vset.pattern.permute.xlu0 0
        %258 = vperm.xlu0 %257, %v222
        %v259 = vpop.permute.xlu0 %258
        %262 = vset.pattern.permute.xlu0 0
        %263 = vperm.xlu0 %262, %v223
        %v264 = vpop.permute.xlu0 %263
        %267 = vset.pattern.permute.xlu0 0
        %268 = vperm.xlu0 %267, %v224
        %v269 = vpop.permute.xlu0 %268
        %272 = vset.pattern.permute.xlu0 0
        %273 = vperm.xlu0 %272, %v225
        %v274 = vpop.permute.xlu0 %273
        %277 = vset.pattern.permute.xlu0 0
        %278 = vperm.xlu0 %277, %v226
        %v279 = vpop.permute.xlu0 %278
        %282 = vset.pattern.permute.xlu0 0
        %283 = vperm.xlu0 %282, %v227
        %v284 = vpop.permute.xlu0 %283
        %287 = vset.pattern.permute.xlu0 0
        %288 = vperm.xlu0 %287, %v228
        %v289 = vpop.permute.xlu0 %288
        %292 = vset.pattern.permute.xlu0 0
        %293 = vperm.xlu0 %292, %v229
        %v294 = vpop.permute.xlu0 %293
        %297 = vset.pattern.permute.xlu0 0
        %298 = vperm.xlu0 %297, %v230
        %v299 = vpop.permute.xlu0 %298
        %302 = vset.pattern.permute.xlu0 0
        %303 = vperm.xlu0 %302, %v231
        %v304 = vpop.permute.xlu0 %303
        %307 = vset.pattern.permute.xlu0 0
        %308 = vperm.xlu0 %307, %v232
        %v309 = vpop.permute.xlu0 %308
        %312 = vset.pattern.permute.xlu0 0
        %313 = vperm.xlu0 %312, %v233
        %v314 = vpop.permute.xlu0 %313
        %v316 = vlaneseq
        %v317 = vshrl.u32 %v316, 7
        %v318 = vsub.s32 0, %v317
        %v319 = vrot.slane %v235, %v318
        %v320 = vmul.f32 %v239, %v319
        %v321 = vmul.f32 %v244, %v319
        %v322 = vmul.f32 %v249, %v319
        %v323 = vmul.f32 %v254, %v319
        %v324 = vmul.f32 %v259, %v319
        %v325 = vmul.f32 %v264, %v319
        %v326 = vmul.f32 %v269, %v319
        %v327 = vmul.f32 %v274, %v319
        %v328 = vmul.f32 %v279, %v319
        %v329 = vmul.f32 %v284, %v319
        %v330 = vmul.f32 %v289, %v319
        %v331 = vmul.f32 %v294, %v319
        %v332 = vmul.f32 %v299, %v319
        %v333 = vmul.f32 %v304, %v319
        %v334 = vmul.f32 %v309, %v319
        %v335 = vmul.f32 %v314, %v319
        %336 = vset.pattern.permute.xlu0 1
        %337 = vperm.xlu0 %336, %v218
        %v338 = vpop.permute.xlu0 %337
        %340 = vset.pattern.permute.xlu0 1
        %341 = vperm.xlu0 %340, %v219
        %v342 = vpop.permute.xlu0 %341
        %344 = vset.pattern.permute.xlu0 1
        %345 = vperm.xlu0 %344, %v220
        %v346 = vpop.permute.xlu0 %345
        %348 = vset.pattern.permute.xlu0 1
        %349 = vperm.xlu0 %348, %v221
        %v350 = vpop.permute.xlu0 %349
        %352 = vset.pattern.permute.xlu0 1
        %353 = vperm.xlu0 %352, %v222
        %v354 = vpop.permute.xlu0 %353
        %356 = vset.pattern.permute.xlu0 1
        %357 = vperm.xlu0 %356, %v223
        %v358 = vpop.permute.xlu0 %357
        %360 = vset.pattern.permute.xlu0 1
        %361 = vperm.xlu0 %360, %v224
        %v362 = vpop.permute.xlu0 %361
        %364 = vset.pattern.permute.xlu0 1
        %365 = vperm.xlu0 %364, %v225
        %v366 = vpop.permute.xlu0 %365
        %368 = vset.pattern.permute.xlu0 1
        %369 = vperm.xlu0 %368, %v226
        %v370 = vpop.permute.xlu0 %369
        %372 = vset.pattern.permute.xlu0 1
        %373 = vperm.xlu0 %372, %v227
        %v374 = vpop.permute.xlu0 %373
        %376 = vset.pattern.permute.xlu0 1
        %377 = vperm.xlu0 %376, %v228
        %v378 = vpop.permute.xlu0 %377
        %380 = vset.pattern.permute.xlu0 1
        %381 = vperm.xlu0 %380, %v229
        %v382 = vpop.permute.xlu0 %381
        %384 = vset.pattern.permute.xlu0 1
        %385 = vperm.xlu0 %384, %v230
        %v386 = vpop.permute.xlu0 %385
        %388 = vset.pattern.permute.xlu0 1
        %389 = vperm.xlu0 %388, %v231
        %v390 = vpop.permute.xlu0 %389
        %392 = vset.pattern.permute.xlu0 1
        %393 = vperm.xlu0 %392, %v232
        %v394 = vpop.permute.xlu0 %393
        %396 = vset.pattern.permute.xlu0 1
        %397 = vperm.xlu0 %396, %v233
        %v398 = vpop.permute.xlu0 %397
        %v400 = vlaneseq
        %v401 = vshrl.u32 %v400, 7
        %v402 = vsub.s32 1, %v401
        %v403 = vrot.slane %v235, %v402
        %v404 = vmul.f32 %v338, %v403
        %v405 = vmul.f32 %v342, %v403
        %v406 = vmul.f32 %v346, %v403
        %v407 = vmul.f32 %v350, %v403
        %v408 = vmul.f32 %v354, %v403
        %v409 = vmul.f32 %v358, %v403
        %v410 = vmul.f32 %v362, %v403
        %v411 = vmul.f32 %v366, %v403
        %v412 = vmul.f32 %v370, %v403
        %v413 = vmul.f32 %v374, %v403
        %v414 = vmul.f32 %v378, %v403
        %v415 = vmul.f32 %v382, %v403
        %v416 = vmul.f32 %v386, %v403
        %v417 = vmul.f32 %v390, %v403
        %v418 = vmul.f32 %v394, %v403
        %v419 = vmul.f32 %v398, %v403
        %v420 = vadd.f32 %v320, %v404
        %v421 = vadd.f32 %v321, %v405
        %v422 = vadd.f32 %v322, %v406
        %v423 = vadd.f32 %v323, %v407
        %v424 = vadd.f32 %v324, %v408
        %v425 = vadd.f32 %v325, %v409
        %v426 = vadd.f32 %v326, %v410
        %v427 = vadd.f32 %v327, %v411
        %v428 = vadd.f32 %v328, %v412
        %v429 = vadd.f32 %v329, %v413
        %v430 = vadd.f32 %v330, %v414
        %v431 = vadd.f32 %v331, %v415
        %v432 = vadd.f32 %v332, %v416
        %v433 = vadd.f32 %v333, %v417
        %v434 = vadd.f32 %v334, %v418
        %v435 = vadd.f32 %v335, %v419
        %436 = vset.pattern.permute.xlu0 2
        %437 = vperm.xlu0 %436, %v218
        %v438 = vpop.permute.xlu0 %437
        %440 = vset.pattern.permute.xlu0 2
        %441 = vperm.xlu0 %440, %v219
        %v442 = vpop.permute.xlu0 %441
        %444 = vset.pattern.permute.xlu0 2
        %445 = vperm.xlu0 %444, %v220
        %v446 = vpop.permute.xlu0 %445
        %448 = vset.pattern.permute.xlu0 2
        %449 = vperm.xlu0 %448, %v221
        %v450 = vpop.permute.xlu0 %449
        %452 = vset.pattern.permute.xlu0 2
        %453 = vperm.xlu0 %452, %v222
        %v454 = vpop.permute.xlu0 %453
        %456 = vset.pattern.permute.xlu0 2
        %457 = vperm.xlu0 %456, %v223
        %v458 = vpop.permute.xlu0 %457
        %460 = vset.pattern.permute.xlu0 2
        %461 = vperm.xlu0 %460, %v224
        %v462 = vpop.permute.xlu0 %461
        %464 = vset.pattern.permute.xlu0 2
        %465 = vperm.xlu0 %464, %v225
        %v466 = vpop.permute.xlu0 %465
        %468 = vset.pattern.permute.xlu0 2
        %469 = vperm.xlu0 %468, %v226
        %v470 = vpop.permute.xlu0 %469
        %472 = vset.pattern.permute.xlu0 2
        %473 = vperm.xlu0 %472, %v227
        %v474 = vpop.permute.xlu0 %473
        %476 = vset.pattern.permute.xlu0 2
        %477 = vperm.xlu0 %476, %v228
        %v478 = vpop.permute.xlu0 %477
        %480 = vset.pattern.permute.xlu0 2
        %481 = vperm.xlu0 %480, %v229
        %v482 = vpop.permute.xlu0 %481
        %484 = vset.pattern.permute.xlu0 2
        %485 = vperm.xlu0 %484, %v230
        %v486 = vpop.permute.xlu0 %485
        %488 = vset.pattern.permute.xlu0 2
        %489 = vperm.xlu0 %488, %v231
        %v490 = vpop.permute.xlu0 %489
        %492 = vset.pattern.permute.xlu0 2
        %493 = vperm.xlu0 %492, %v232
        %v494 = vpop.permute.xlu0 %493
        %496 = vset.pattern.permute.xlu0 2
        %497 = vperm.xlu0 %496, %v233
        %v498 = vpop.permute.xlu0 %497
        %v500 = vlaneseq
        %v501 = vshrl.u32 %v500, 7
        %v502 = vsub.s32 2, %v501
        %v503 = vrot.slane %v235, %v502
        %v504 = vmul.f32 %v438, %v503
        %v505 = vmul.f32 %v442, %v503
        %v506 = vmul.f32 %v446, %v503
        %v507 = vmul.f32 %v450, %v503
        %v508 = vmul.f32 %v454, %v503
        %v509 = vmul.f32 %v458, %v503
        %v510 = vmul.f32 %v462, %v503
        %v511 = vmul.f32 %v466, %v503
        %v512 = vmul.f32 %v470, %v503
        %v513 = vmul.f32 %v474, %v503
        %v514 = vmul.f32 %v478, %v503
        %v515 = vmul.f32 %v482, %v503
        %v516 = vmul.f32 %v486, %v503
        %v517 = vmul.f32 %v490, %v503
        %v518 = vmul.f32 %v494, %v503
        %v519 = vmul.f32 %v498, %v503
        %v520 = vadd.f32 %v420, %v504
        %v521 = vadd.f32 %v421, %v505
        %v522 = vadd.f32 %v422, %v506
        %v523 = vadd.f32 %v423, %v507
        %v524 = vadd.f32 %v424, %v508
        %v525 = vadd.f32 %v425, %v509
        %v526 = vadd.f32 %v426, %v510
        %v527 = vadd.f32 %v427, %v511
        %v528 = vadd.f32 %v428, %v512
        %v529 = vadd.f32 %v429, %v513
        %v530 = vadd.f32 %v430, %v514
        %v531 = vadd.f32 %v431, %v515
        %v532 = vadd.f32 %v432, %v516
        %v533 = vadd.f32 %v433, %v517
        %v534 = vadd.f32 %v434, %v518
        %v535 = vadd.f32 %v435, %v519
        %536 = vset.pattern.permute.xlu0 3
        %537 = vperm.xlu0 %536, %v218
        %v538 = vpop.permute.xlu0 %537
        %540 = vset.pattern.permute.xlu0 3
        %541 = vperm.xlu0 %540, %v219
        %v542 = vpop.permute.xlu0 %541
        %544 = vset.pattern.permute.xlu0 3
        %545 = vperm.xlu0 %544, %v220
        %v546 = vpop.permute.xlu0 %545
        %548 = vset.pattern.permute.xlu0 3
        %549 = vperm.xlu0 %548, %v221
        %v550 = vpop.permute.xlu0 %549
        %552 = vset.pattern.permute.xlu0 3
        %553 = vperm.xlu0 %552, %v222
        %v554 = vpop.permute.xlu0 %553
        %556 = vset.pattern.permute.xlu0 3
        %557 = vperm.xlu0 %556, %v223
        %v558 = vpop.permute.xlu0 %557
        %560 = vset.pattern.permute.xlu0 3
        %561 = vperm.xlu0 %560, %v224
        %v562 = vpop.permute.xlu0 %561
        %564 = vset.pattern.permute.xlu0 3
        %565 = vperm.xlu0 %564, %v225
        %v566 = vpop.permute.xlu0 %565
        %568 = vset.pattern.permute.xlu0 3
        %569 = vperm.xlu0 %568, %v226
        %v570 = vpop.permute.xlu0 %569
        %572 = vset.pattern.permute.xlu0 3
        %573 = vperm.xlu0 %572, %v227
        %v574 = vpop.permute.xlu0 %573
        %576 = vset.pattern.permute.xlu0 3
        %577 = vperm.xlu0 %576, %v228
        %v578 = vpop.permute.xlu0 %577
        %580 = vset.pattern.permute.xlu0 3
        %581 = vperm.xlu0 %580, %v229
        %v582 = vpop.permute.xlu0 %581
        %584 = vset.pattern.permute.xlu0 3
        %585 = vperm.xlu0 %584, %v230
        %v586 = vpop.permute.xlu0 %585
        %588 = vset.pattern.permute.xlu0 3
        %589 = vperm.xlu0 %588, %v231
        %v590 = vpop.permute.xlu0 %589
        %592 = vset.pattern.permute.xlu0 3
        %593 = vperm.xlu0 %592, %v232
        %v594 = vpop.permute.xlu0 %593
        %596 = vset.pattern.permute.xlu0 3
        %597 = vperm.xlu0 %596, %v233
        %v598 = vpop.permute.xlu0 %597
        %v600 = vlaneseq
        %v601 = vshrl.u32 %v600, 7
        %v602 = vsub.s32 3, %v601
        %v603 = vrot.slane %v235, %v602
        %v604 = vmul.f32 %v538, %v603
        %v605 = vmul.f32 %v542, %v603
        %v606 = vmul.f32 %v546, %v603
        %v607 = vmul.f32 %v550, %v603
        %v608 = vmul.f32 %v554, %v603
        %v609 = vmul.f32 %v558, %v603
        %v610 = vmul.f32 %v562, %v603
        %v611 = vmul.f32 %v566, %v603
        %v612 = vmul.f32 %v570, %v603
        %v613 = vmul.f32 %v574, %v603
        %v614 = vmul.f32 %v578, %v603
        %v615 = vmul.f32 %v582, %v603
        %v616 = vmul.f32 %v586, %v603
        %v617 = vmul.f32 %v590, %v603
        %v618 = vmul.f32 %v594, %v603
        %v619 = vmul.f32 %v598, %v603
        %v620 = vadd.f32 %v520, %v604
        %v621 = vadd.f32 %v521, %v605
        %v622 = vadd.f32 %v522, %v606
        %v623 = vadd.f32 %v523, %v607
        %v624 = vadd.f32 %v524, %v608
        %v625 = vadd.f32 %v525, %v609
        %v626 = vadd.f32 %v526, %v610
        %v627 = vadd.f32 %v527, %v611
        %v628 = vadd.f32 %v528, %v612
        %v629 = vadd.f32 %v529, %v613
        %v630 = vadd.f32 %v530, %v614
        %v631 = vadd.f32 %v531, %v615
        %v632 = vadd.f32 %v532, %v616
        %v633 = vadd.f32 %v533, %v617
        %v634 = vadd.f32 %v534, %v618
        %v635 = vadd.f32 %v535, %v619
        %v636 = vmax.f32 %v620, 0.0
        %v637 = vmax.f32 %v621, 0.0
        %v638 = vmax.f32 %v622, 0.0
        %v639 = vmax.f32 %v623, 0.0
        %v640 = vmax.f32 %v624, 0.0
        %v641 = vmax.f32 %v625, 0.0
        %v642 = vmax.f32 %v626, 0.0
        %v643 = vmax.f32 %v627, 0.0
        %v644 = vmax.f32 %v628, 0.0
        %v645 = vmax.f32 %v629, 0.0
        %v646 = vmax.f32 %v630, 0.0
        %v647 = vmax.f32 %v631, 0.0
        %v648 = vmax.f32 %v632, 0.0
        %v649 = vmax.f32 %v633, 0.0
        %v650 = vmax.f32 %v634, 0.0
        %v651 = vmax.f32 %v635, 0.0
        %652 = vadd.xlane.f32.xlu0 %v636
        %v653 = vpop.xlane.xlu0 %652
        %654 = vadd.xlane.f32.xlu0 %v637
        %v655 = vpop.xlane.xlu0 %654
        %656 = vadd.xlane.f32.xlu0 %v638
        %v657 = vpop.xlane.xlu0 %656
        %658 = vadd.xlane.f32.xlu0 %v639
        %v659 = vpop.xlane.xlu0 %658
        %660 = vadd.xlane.f32.xlu0 %v640
        %v661 = vpop.xlane.xlu0 %660
        %662 = vadd.xlane.f32.xlu0 %v641
        %v663 = vpop.xlane.xlu0 %662
        %664 = vadd.xlane.f32.xlu0 %v642
        %v665 = vpop.xlane.xlu0 %664
        %666 = vadd.xlane.f32.xlu0 %v643
        %v667 = vpop.xlane.xlu0 %666
        %668 = vadd.xlane.f32.xlu0 %v644
        %v669 = vpop.xlane.xlu0 %668
        %670 = vadd.xlane.f32.xlu0 %v645
        %v671 = vpop.xlane.xlu0 %670
        %672 = vadd.xlane.f32.xlu0 %v646
        %v673 = vpop.xlane.xlu0 %672
        %674 = vadd.xlane.f32.xlu0 %v647
        %v675 = vpop.xlane.xlu0 %674
        %676 = vadd.xlane.f32.xlu0 %v648
        %v677 = vpop.xlane.xlu0 %676
        %678 = vadd.xlane.f32.xlu0 %v649
        %v679 = vpop.xlane.xlu0 %678
        %680 = vadd.xlane.f32.xlu0 %v650
        %v681 = vpop.xlane.xlu0 %680
        %682 = vadd.xlane.f32.xlu0 %v651
        %v683 = vpop.xlane.xlu0 %682
        %s684 = scalar_lea.vmem %s172, 2 [#allocation2]
        %v685 = vld [vmem:[%s684] sm:$0x3]
        %v686 = vunpack.c.l.bf16 %v685
        %v687 = vlaneseq
        %v688 = vshrl.u32 %v687, 7
        %v689 = vsub.s32 0, %v688
        %v690 = vrot.slane %v686, %v689
        %v691 = vmul.f32 %v239, %v690
        %v692 = vmul.f32 %v244, %v690
        %v693 = vmul.f32 %v249, %v690
        %v694 = vmul.f32 %v254, %v690
        %v695 = vmul.f32 %v259, %v690
        %v696 = vmul.f32 %v264, %v690
        %v697 = vmul.f32 %v269, %v690
        %v698 = vmul.f32 %v274, %v690
        %v699 = vmul.f32 %v279, %v690
        %v700 = vmul.f32 %v284, %v690
        %v701 = vmul.f32 %v289, %v690
        %v702 = vmul.f32 %v294, %v690
        %v703 = vmul.f32 %v299, %v690
        %v704 = vmul.f32 %v304, %v690
        %v705 = vmul.f32 %v309, %v690
        %v706 = vmul.f32 %v314, %v690
        %v707 = vlaneseq
        %v708 = vshrl.u32 %v707, 7
        %v709 = vsub.s32 1, %v708
        %v710 = vrot.slane %v686, %v709
        %v711 = vmul.f32 %v338, %v710
        %v712 = vmul.f32 %v342, %v710
        %v713 = vmul.f32 %v346, %v710
        %v714 = vmul.f32 %v350, %v710
        %v715 = vmul.f32 %v354, %v710
        %v716 = vmul.f32 %v358, %v710
        %v717 = vmul.f32 %v362, %v710
        %v718 = vmul.f32 %v366, %v710
        %v719 = vmul.f32 %v370, %v710
        %v720 = vmul.f32 %v374, %v710
        %v721 = vmul.f32 %v378, %v710
        %v722 = vmul.f32 %v382, %v710
        %v723 = vmul.f32 %v386, %v710
        %v724 = vmul.f32 %v390, %v710
        %v725 = vmul.f32 %v394, %v710
        %v726 = vmul.f32 %v398, %v710
        %v727 = vadd.f32 %v691, %v711
        %v728 = vadd.f32 %v692, %v712
        %v729 = vadd.f32 %v693, %v713
        %v730 = vadd.f32 %v694, %v714
        %v731 = vadd.f32 %v695, %v715
        %v732 = vadd.f32 %v696, %v716
        %v733 = vadd.f32 %v697, %v717
        %v734 = vadd.f32 %v698, %v718
        %v735 = vadd.f32 %v699, %v719
        %v736 = vadd.f32 %v700, %v720
        %v737 = vadd.f32 %v701, %v721
        %v738 = vadd.f32 %v702, %v722
        %v739 = vadd.f32 %v703, %v723
        %v740 = vadd.f32 %v704, %v724
        %v741 = vadd.f32 %v705, %v725
        %v742 = vadd.f32 %v706, %v726
        %v743 = vlaneseq
        %v744 = vshrl.u32 %v743, 7
        %v745 = vsub.s32 2, %v744
        %v746 = vrot.slane %v686, %v745
        %v747 = vmul.f32 %v438, %v746
        %v748 = vmul.f32 %v442, %v746
        %v749 = vmul.f32 %v446, %v746
        %v750 = vmul.f32 %v450, %v746
        %v751 = vmul.f32 %v454, %v746
        %v752 = vmul.f32 %v458, %v746
        %v753 = vmul.f32 %v462, %v746
        %v754 = vmul.f32 %v466, %v746
        %v755 = vmul.f32 %v470, %v746
        %v756 = vmul.f32 %v474, %v746
        %v757 = vmul.f32 %v478, %v746
        %v758 = vmul.f32 %v482, %v746
        %v759 = vmul.f32 %v486, %v746
        %v760 = vmul.f32 %v490, %v746
        %v761 = vmul.f32 %v494, %v746
        %v762 = vmul.f32 %v498, %v746
        %v763 = vadd.f32 %v727, %v747
        %v764 = vadd.f32 %v728, %v748
        %v765 = vadd.f32 %v729, %v749
        %v766 = vadd.f32 %v730, %v750
        %v767 = vadd.f32 %v731, %v751
        %v768 = vadd.f32 %v732, %v752
        %v769 = vadd.f32 %v733, %v753
        %v770 = vadd.f32 %v734, %v754
        %v771 = vadd.f32 %v735, %v755
        %v772 = vadd.f32 %v736, %v756
        %v773 = vadd.f32 %v737, %v757
        %v774 = vadd.f32 %v738, %v758
        %v775 = vadd.f32 %v739, %v759
        %v776 = vadd.f32 %v740, %v760
        %v777 = vadd.f32 %v741, %v761
        %v778 = vadd.f32 %v742, %v762
        %v779 = vlaneseq
        %v780 = vshrl.u32 %v779, 7
        %v781 = vsub.s32 3, %v780
        %v782 = vrot.slane %v686, %v781
        %v783 = vmul.f32 %v538, %v782
        %v784 = vmul.f32 %v542, %v782
        %v785 = vmul.f32 %v546, %v782
        %v786 = vmul.f32 %v550, %v782
        %v787 = vmul.f32 %v554, %v782
        %v788 = vmul.f32 %v558, %v782
        %v789 = vmul.f32 %v562, %v782
        %v790 = vmul.f32 %v566, %v782
        %v791 = vmul.f32 %v570, %v782
        %v792 = vmul.f32 %v574, %v782
        %v793 = vmul.f32 %v578, %v782
        %v794 = vmul.f32 %v582, %v782
        %v795 = vmul.f32 %v586, %v782
        %v796 = vmul.f32 %v590, %v782
        %v797 = vmul.f32 %v594, %v782
        %v798 = vmul.f32 %v598, %v782
        %v799 = vadd.f32 %v763, %v783
        %v800 = vadd.f32 %v764, %v784
        %v801 = vadd.f32 %v765, %v785
        %v802 = vadd.f32 %v766, %v786
        %v803 = vadd.f32 %v767, %v787
        %v804 = vadd.f32 %v768, %v788
        %v805 = vadd.f32 %v769, %v789
        %v806 = vadd.f32 %v770, %v790
        %v807 = vadd.f32 %v771, %v791
        %v808 = vadd.f32 %v772, %v792
        %v809 = vadd.f32 %v773, %v793
        %v810 = vadd.f32 %v774, %v794
        %v811 = vadd.f32 %v775, %v795
        %v812 = vadd.f32 %v776, %v796
        %v813 = vadd.f32 %v777, %v797
        %v814 = vadd.f32 %v778, %v798
        %v815 = vmax.f32 %v799, 0.0
        %v816 = vmax.f32 %v800, 0.0
        %v817 = vmax.f32 %v801, 0.0
        %v818 = vmax.f32 %v802, 0.0
        %v819 = vmax.f32 %v803, 0.0
        %v820 = vmax.f32 %v804, 0.0
        %v821 = vmax.f32 %v805, 0.0
        %v822 = vmax.f32 %v806, 0.0
        %v823 = vmax.f32 %v807, 0.0
        %v824 = vmax.f32 %v808, 0.0
        %v825 = vmax.f32 %v809, 0.0
        %v826 = vmax.f32 %v810, 0.0
        %v827 = vmax.f32 %v811, 0.0
        %v828 = vmax.f32 %v812, 0.0
        %v829 = vmax.f32 %v813, 0.0
        %v830 = vmax.f32 %v814, 0.0
        %831 = vadd.xlane.f32.xlu0 %v815
        %v832 = vpop.xlane.xlu0 %831
        %833 = vadd.xlane.f32.xlu0 %v816
        %v834 = vpop.xlane.xlu0 %833
        %835 = vadd.xlane.f32.xlu0 %v817
        %v836 = vpop.xlane.xlu0 %835
        %837 = vadd.xlane.f32.xlu0 %v818
        %v838 = vpop.xlane.xlu0 %837
        %839 = vadd.xlane.f32.xlu0 %v819
        %v840 = vpop.xlane.xlu0 %839
        %841 = vadd.xlane.f32.xlu0 %v820
        %v842 = vpop.xlane.xlu0 %841
        %843 = vadd.xlane.f32.xlu0 %v821
        %v844 = vpop.xlane.xlu0 %843
        %845 = vadd.xlane.f32.xlu0 %v822
        %v846 = vpop.xlane.xlu0 %845
        %847 = vadd.xlane.f32.xlu0 %v823
        %v848 = vpop.xlane.xlu0 %847
        %849 = vadd.xlane.f32.xlu0 %v824
        %v850 = vpop.xlane.xlu0 %849
        %851 = vadd.xlane.f32.xlu0 %v825
        %v852 = vpop.xlane.xlu0 %851
        %853 = vadd.xlane.f32.xlu0 %v826
        %v854 = vpop.xlane.xlu0 %853
        %855 = vadd.xlane.f32.xlu0 %v827
        %v856 = vpop.xlane.xlu0 %855
        %857 = vadd.xlane.f32.xlu0 %v828
        %v858 = vpop.xlane.xlu0 %857
        %859 = vadd.xlane.f32.xlu0 %v829
        %v860 = vpop.xlane.xlu0 %859
        %861 = vadd.xlane.f32.xlu0 %v830
        %v862 = vpop.xlane.xlu0 %861
        %v863 = vld [vmem:[%s196] sm:$0xff]
        %v864 = vld [vmem:[%s196 + $0x8] sm:$0xff]
        %v865 = vld [vmem:[%s196 + $0x10] sm:$0xff]
        %v866 = vld [vmem:[%s196 + $0x18] sm:$0xff]
        %v867 = vld [vmem:[%s196 + $0x20] sm:$0xff]
        %v868 = vld [vmem:[%s196 + $0x28] sm:$0xff]
        %v869 = vld [vmem:[%s196 + $0x30] sm:$0xff]
        %v870 = vld [vmem:[%s196 + $0x38] sm:$0xff]
        %v871 = vld [vmem:[%s196 + $0x40] sm:$0xff]
        %v872 = vld [vmem:[%s196 + $0x48] sm:$0xff]
        %v873 = vld [vmem:[%s196 + $0x50] sm:$0xff]
        %v874 = vld [vmem:[%s196 + $0x58] sm:$0xff]
        %v875 = vld [vmem:[%s196 + $0x60] sm:$0xff]
        %v876 = vld [vmem:[%s196 + $0x68] sm:$0xff]
        %v877 = vld [vmem:[%s196 + $0x70] sm:$0xff]
        %v878 = vld [vmem:[%s196 + $0x78] sm:$0xff]
        %vm879 = vcmask 7168
        %v880 = vsel %vm879, %v653, %v832
        %v881 = vsel %vm879, %v655, %v834
        %v882 = vsel %vm879, %v657, %v836
        %v883 = vsel %vm879, %v659, %v838
        %v884 = vsel %vm879, %v661, %v840
        %v885 = vsel %vm879, %v663, %v842
        %v886 = vsel %vm879, %v665, %v844
        %v887 = vsel %vm879, %v667, %v846
        %v888 = vsel %vm879, %v669, %v848
        %v889 = vsel %vm879, %v671, %v850
        %v890 = vsel %vm879, %v673, %v852
        %v891 = vsel %vm879, %v675, %v854
        %v892 = vsel %vm879, %v677, %v856
        %v893 = vsel %vm879, %v679, %v858
        %v894 = vsel %vm879, %v681, %v860
        %v895 = vsel %vm879, %v683, %v862
        %v896 = vadd.f32 %v863, %v880
        %v897 = vadd.f32 %v864, %v881
        %v898 = vadd.f32 %v865, %v882
        %v899 = vadd.f32 %v866, %v883
        %v900 = vadd.f32 %v867, %v884
        %v901 = vadd.f32 %v868, %v885
        %v902 = vadd.f32 %v869, %v886
        %v903 = vadd.f32 %v870, %v887
        %v904 = vadd.f32 %v871, %v888
        %v905 = vadd.f32 %v872, %v889
        %v906 = vadd.f32 %v873, %v890
        %v907 = vadd.f32 %v874, %v891
        %v908 = vadd.f32 %v875, %v892
        %v909 = vadd.f32 %v876, %v893
        %v910 = vadd.f32 %v877, %v894
        %v911 = vadd.f32 %v878, %v895
        %vm912 = vcmask 15360
        %913 = vst.msk [vmem:[%s196] sm:$0xff] %vm912, %v896
        %914 = vst.msk [vmem:[%s196 + $0x8] sm:$0xff] %vm912, %v897
        %915 = vst.msk [vmem:[%s196 + $0x10] sm:$0xff] %vm912, %v898
        %916 = vst.msk [vmem:[%s196 + $0x18] sm:$0xff] %vm912, %v899
        %917 = vst.msk [vmem:[%s196 + $0x20] sm:$0xff] %vm912, %v900
        %918 = vst.msk [vmem:[%s196 + $0x28] sm:$0xff] %vm912, %v901
        %919 = vst.msk [vmem:[%s196 + $0x30] sm:$0xff] %vm912, %v902
        %920 = vst.msk [vmem:[%s196 + $0x38] sm:$0xff] %vm912, %v903
        %921 = vst.msk [vmem:[%s196 + $0x40] sm:$0xff] %vm912, %v904
        %922 = vst.msk [vmem:[%s196 + $0x48] sm:$0xff] %vm912, %v905
        %923 = vst.msk [vmem:[%s196 + $0x50] sm:$0xff] %vm912, %v906
        %924 = vst.msk [vmem:[%s196 + $0x58] sm:$0xff] %vm912, %v907
        %925 = vst.msk [vmem:[%s196 + $0x60] sm:$0xff] %vm912, %v908
        %926 = vst.msk [vmem:[%s196 + $0x68] sm:$0xff] %vm912, %v909
        %927 = vst.msk [vmem:[%s196 + $0x70] sm:$0xff] %vm912, %v910
        %928 = vst.msk [vmem:[%s196 + $0x78] sm:$0xff] %vm912, %v911
        %p929 = scmp.lt.s32.totalorder %s17, 1
        %s930 = scalar_select %p929, %s17, 1
        %s931 = smul.addr %s930, 16
        %s932 = smul.addr %s931, 8
        %s933 = scalar_lea.vmem %s2, %s932
        // Predicated region
        $region67: #{tpu_custom_call.1} parent=57 // pred_check
          %p934 = pneg %p92
        $region68: #{tpu_custom_call.1} parent=57 // pred_check_branch
          %936 = sbr.rel (%p934) target = $region70
        $region69: #{tpu_custom_call.1} parent=57 // pred_region
          _
        $region70: #{tpu_custom_call.1} parent=57 // pred_fallthru
          _
      $region58: #{tpu_custom_call.1} parent=5 // pred_fallthru
        _
      %p937 = scmp.le.s32.totalorder 2, %s8
      // Predicated region
      $region71: #{tpu_custom_call.1} parent=5 // pred_check
        %p938 = pneg %p937
      $region72: #{tpu_custom_call.1} parent=5 // pred_check_branch
        %940 = sbr.rel (%p938) target = $region74
      $region73: #{tpu_custom_call.1} parent=5 // pred_region
        %s941 = ssub.s32 %s8, 2
        // Predicated region
        $region75: #{tpu_custom_call.1} parent=73 // pred_check
          %p942 = pneg %p98
        $region76: #{tpu_custom_call.1} parent=73 // pred_check_branch
          %944 = sbr.rel (%p942) target = $region78
        $region77: #{tpu_custom_call.1} parent=73 // pred_region
          %p945 = scmp.lt.s32.totalorder %s19, 1
          %s946 = scalar_select %p945, %s19, 1
          %s947 = smul.addr %s946, 16
          %s948 = smul.addr %s947, 8
          %s949 = scalar_lea.vmem %s2, %s948
        $region78: #{tpu_custom_call.1} parent=73 // pred_fallthru
          _
      $region74: #{tpu_custom_call.1} parent=5 // pred_fallthru
        _
    $region6: #{tpu_custom_call.1} parent=1 // loop_footer
      %s12 = sadd.s32 1, %s8
    $region7: #{tpu_custom_call.1} parent=1 // loop_footer_branch
      %7 = sbr.rel target = $region3
    $region8: #{tpu_custom_call.1} parent=1 // loop_exit
      _

</llo_original>
